<compile_context>
chip_gen: v7x
topology: tpu7x:2x2x1
jax: 0.10.0
libtpu: 0.0.40
codegen_flags: <defaults>
</compile_context>

<pallas_src>
import functools

import jax
import jax.numpy as jnp
from jax.experimental import pallas as pl
from jax.experimental.pallas import tpu as pltpu


# ---------------------------------------------------------------------------
# Kernel (single body; has_residual / has_bias / emit_res select the ref list)
# ---------------------------------------------------------------------------
def _rmsnorm_kernel(*refs, eps, has_residual, has_bias, emit_res):
    it = iter(refs)
    x_ref = next(it)
    r_ref = next(it) if has_residual else None
    w_ref = next(it)
    b_ref = next(it) if has_bias else None
    o_ref = next(it)
    res_ref = next(it) if emit_res else None

    x = x_ref[...].astype(jnp.float32)                      # (tm, H)
    if has_residual:
        x = x + r_ref[...].astype(jnp.float32)              # fp32 accumulation
    if emit_res:
        # fused cast/store of the residual stream (no extra wrapper-side pass)
        res_ref[...] = x.astype(res_ref.dtype)

    # Per-row reduction along H only: garbage rows in a partial last block
    # cannot contaminate valid rows, and their stores are masked by Pallas.
    ms = jnp.mean(x * x, axis=-1, keepdims=True)            # (tm, 1)
    inv = jax.lax.rsqrt(ms + eps)                           # EUP rsqrt

    w = w_ref[...].astype(jnp.float32)                      # (1, H)
    y = (x * inv) * w
    if has_bias:
        y = y + b_ref[...].astype(jnp.float32)
    o_ref[...] = y.astype(o_ref.dtype)


# ---------------------------------------------------------------------------
# Tile-size helpers
# ---------------------------------------------------------------------------
def _sublane_multiple(dtype):
    bits = jnp.dtype(dtype).itemsize * 8
    if bits >= 32:
        return 8
    if bits == 16:
        return 16
    return 32


def _round_down(v, m):
    return max(m, (v // m) * m)


def _num_tensorcores():
    """Best-effort TensorCores-per-chip query (2 on v7x).  Fallback: 1."""
    try:
        info = pltpu.get_tpu_info()
        for attr in ("num_cores", "core_count", "num_tensorcores",
                     "tensorcore_count", "cores_per_chip"):
            v = getattr(info, attr, None)
            if isinstance(v, int) and 1 <= v <= 8:
                return v
    except Exception:
        pass
    return 1


def _choose_block_rows(rows, bytes_per_row, f32_tmp_per_row, gran,
                       vmem_budget_bytes, target_step_bytes, min_steps):
    if rows <= gran:
        return rows                                   # single full block
    # (a) amortize the ~0.35 us per-grid-step overhead: target HBM bytes/step
    tm = max(target_step_bytes // bytes_per_row, gran)
    # (b) double-buffered I/O tiles + in-kernel fp32 intermediates fit VMEM
    tm = min(tm, max(vmem_budget_bytes // (2 * bytes_per_row + f32_tmp_per_row),
                     gran))
    # (c) keep >= min_steps grid steps so 2-TC chips (v7x) use both cores
    if min_steps > 1 and rows >= min_steps * gran:
        tm = min(tm, pl.cdiv(rows, min_steps))
    tm = min(tm, rows)
    return _round_down(max(tm, gran), gran)


# ---------------------------------------------------------------------------
# Wrapper
# ---------------------------------------------------------------------------
def rms_norm(x, weight, bias=None, residual=None, *, eps=1e-5, prenorm=False,
             residual_in_fp32=True, block_rows=None,
             vmem_budget_bytes=24 * 1024 * 1024,
             target_step_bytes=8 * 1024 * 1024):
    """Pallas RMSNorm matching the PyTorch module's forward.

    x: (..., hidden). Returns out (same shape/dtype as x); if prenorm, returns
    (out, residual_stream), residual_stream fp32 when residual_in_fp32.
    """
    orig_shape = x.shape
    H = orig_shape[-1]
    rows = 1
    for d in orig_shape[:-1]:
        rows *= d

    has_residual = residual is not None
    has_bias = bias is not None
    emit_res = bool(prenorm)
    res_dtype = jnp.float32 if residual_in_fp32 else x.dtype

    # --- tiled refs (row-blocked arrays) and their per-row HBM footprint -----
    tiled_dtypes = [x.dtype]
    if has_residual:
        tiled_dtypes.append(residual.dtype)
    tiled_dtypes.append(x.dtype)                 # out
    if emit_res:
        tiled_dtypes.append(res_dtype)           # residual stream out

    gran = max(_sublane_multiple(dt) for dt in tiled_dtypes)     # 8/16/32
    bytes_per_row = sum(H * jnp.dtype(dt).itemsize for dt in tiled_dtypes)
    f32_tmp_per_row = 3 * H * 4          # x.astype(f32), x*inv, y live in VMEM

    cores = _num_tensorcores()
    min_steps = 2 * cores if cores >= 2 else 2   # 4 on v7x, 2 elsewhere

    if block_rows is None:
        tm = _choose_block_rows(rows, bytes_per_row, f32_tmp_per_row, gran,
                                vmem_budget_bytes, target_step_bytes, min_steps)
    else:
        tm = min(block_rows, rows)
        if rows > gran:
            tm = _round_down(max(tm, gran), gran)

    grid_len = pl.cdiv(rows, tm)

    # --- flatten (no padding: Pallas masks the partial last block) ----------
    x2 = x.reshape(rows, H)
    if has_residual:
        r2 = residual.reshape(rows, H)

    # --- specs ---------------------------------------------------------------
    row_spec = pl.BlockSpec((tm, H), lambda i: (i, 0))
    par_spec = pl.BlockSpec((1, H), lambda i: (0, 0))

    in_specs = [row_spec]
    inputs = [x2]
    if has_residual:
        in_specs.append(row_spec)
        inputs.append(r2)
    in_specs.append(par_spec)
    inputs.append(weight.reshape(1, H))
    if has_bias:
        in_specs.append(par_spec)
        inputs.append(bias.reshape(1, H))

    if emit_res:
        out_shape = (jax.ShapeDtypeStruct((rows, H), x.dtype),
                     jax.ShapeDtypeStruct((rows, H), res_dtype))
        out_specs = (row_spec, row_spec)
    else:
        out_shape = jax.ShapeDtypeStruct((rows, H), x.dtype)
        out_specs = row_spec

    # --- VMEM limit: double-buffered tiles + fp32 temps + params, <=48 MiB ---
    working_set = tm * (2 * bytes_per_row + f32_tmp_per_row)
    working_set += 4 * H * jnp.dtype(weight.dtype).itemsize * (2 if has_bias else 1)
    vmem_limit = min(48 * 1024 * 1024,
                     max(16 * 1024 * 1024, int(working_set * 1.3)))

    kernel = functools.partial(_rmsnorm_kernel, eps=eps,
                               has_residual=has_residual,
                               has_bias=has_bias,
                               emit_res=emit_res)

    result = pl.pallas_call(
        kernel,
        out_shape=out_shape,
        grid=(grid_len,),
        in_specs=in_specs,
        out_specs=out_specs,
        compiler_params=pltpu.CompilerParams(
            dimension_semantics=("parallel",),
            vmem_limit_bytes=vmem_limit),
    )(*inputs)

    if emit_res:
        out, res = result
        return out.reshape(orig_shape), res.reshape(orig_shape)
    return result.reshape(orig_shape)


# ---------------------------------------------------------------------------
# Reference + self-test
# ---------------------------------------------------------------------------
def _rms_norm_ref(x, weight, bias, eps):
    xf = x.astype(jnp.float32)
    inv = jax.lax.rsqrt(jnp.mean(xf * xf, axis=-1, keepdims=True) + eps)
    y = xf * inv * weight.astype(jnp.float32)
    if bias is not None:
        y = y + bias.astype(jnp.float32)
    return y.astype(x.dtype)


if __name__ == "__main__":
    eps = 1e-5
    key = jax.random.PRNGKey(0)
    kx, kr, kw, kb, kx2 = jax.random.split(key, 5)

    batch, seq, hidden = 2, 8, 128
    x = jax.random.normal(kx, (batch, seq, hidden), dtype=jnp.float32)
    residual = jax.random.normal(kr, (batch, seq, hidden), dtype=jnp.float32)
    # Module init is ones/zeros; perturb deterministically to exercise scale/shift.
    weight = 1.0 + 0.1 * jax.random.normal(kw, (hidden,), dtype=jnp.float32)
    bias = 0.05 * jax.random.normal(kb, (hidden,), dtype=jnp.float32)

    # 1) Plain RMSNorm (weight + bias).
    out = jax.block_until_ready(rms_norm(x, weight, bias, eps=eps))
    assert jnp.allclose(out, _rms_norm_ref(x, weight, bias, eps),
                        atol=1e-5, rtol=1e-5), "rmsnorm mismatch"

    # 2) bias=None path (bias-free kernel variant).
    out_nb = jax.block_until_ready(rms_norm(x, weight, None, eps=eps))
    assert jnp.allclose(out_nb, _rms_norm_ref(x, weight, None, eps),
                        atol=1e-5, rtol=1e-5), "rmsnorm(no-bias) mismatch"

    # 3) Residual add + prenorm (fp32 residual stream).
    out2, res2 = rms_norm(x, weight, bias, residual=residual, eps=eps,
                          prenorm=True, residual_in_fp32=True)
    out2 = jax.block_until_ready(out2)
    res2 = jax.block_until_ready(res2)
    ref_res = x.astype(jnp.float32) + residual.astype(jnp.float32)
    assert res2.dtype == jnp.float32
    assert jnp.allclose(res2, ref_res, atol=1e-5, rtol=1e-5), "residual mismatch"
    assert jnp.allclose(out2, _rms_norm_ref(ref_res, weight, bias, eps),
                        atol=1e-5, rtol=1e-5), "rmsnorm+residual mismatch"

    # 4) prenorm without residual (fused fp32 cast) + ragged row count
    #    (exercises the unpadded partial-last-block path: 15 rows).
    x_odd = jax.random.normal(kx2, (3, 5, hidden), dtype=jnp.float32)
    out3, res3 = rms_norm(x_odd, weight, bias, eps=eps, prenorm=True)
    out3 = jax.block_until_ready(out3)
    res3 = jax.block_until_ready(res3)
    assert res3.dtype == jnp.float32
    assert jnp.allclose(res3, x_odd.astype(jnp.float32), atol=1e-5, rtol=1e-5)
    assert jnp.allclose(out3, _rms_norm_ref(x_odd, weight, bias, eps),
                        atol=1e-5, rtol=1e-5), "prenorm(no residual) mismatch"

    print("KERNEL_OK")
</pallas_src>

<mosaic_0001>
module attributes {stable_mosaic.version = 11 : i64} {
  func.func @_rmsnorm_kernel(%arg0: i32, %arg1: memref<8x128xf32, #tpu.memory_space<vmem>>, %arg2: memref<1x128xf32, #tpu.memory_space<vmem>>, %arg3: memref<1x128xf32, #tpu.memory_space<vmem>>, %arg4: memref<8x128xf32, #tpu.memory_space<vmem>>) attributes {dimension_semantics = [#tpu.dimension_semantics<parallel>], iteration_bounds = array<i64: 2>, scalar_prefetch = 0 : i64, scratch_operands = 0 : i64, tpu.core_type = #tpu.core_type<tc>, window_params = [{transform_indices = @transform_0, window_bounds = array<i64: 8, 128>}, {pipeline_mode = #tpu.pipeline_mode<synchronous>, transform_indices = @transform_1, window_bounds = array<i64: 1, 128>}, {pipeline_mode = #tpu.pipeline_mode<synchronous>, transform_indices = @transform_2, window_bounds = array<i64: 1, 128>}, {transform_indices = @transform_3, window_bounds = array<i64: 8, 128>}]} {
    %c0 = arith.constant 0 : index
    %c0_0 = arith.constant 0 : index
    %0 = vector.load %arg1[%c0, %c0_0] : memref<8x128xf32, #tpu.memory_space<vmem>>, vector<8x128xf32>
    %1 = arith.mulf %0, %0 : vector<8x128xf32>
    %cst = arith.constant dense<0.000000e+00> : vector<8xf32>
    %2 = vector.multi_reduction <add>, %1, %cst [1] : vector<8x128xf32> to vector<8xf32>
    %3 = vector.shape_cast %2 : vector<8xf32> to vector<8x1xf32>
    %cst_1 = arith.constant 1.280000e+02 : f32
    %4 = vector.broadcast %cst_1 : f32 to vector<8x1xf32>
    %5 = arith.divf %3, %4 : vector<8x1xf32>
    %cst_2 = arith.constant 9.99999974E-6 : f32
    %6 = vector.broadcast %cst_2 : f32 to vector<8x1xf32>
    %7 = arith.addf %5, %6 : vector<8x1xf32>
    %8 = math.rsqrt %7 : vector<8x1xf32>
    %c0_3 = arith.constant 0 : index
    %c0_4 = arith.constant 0 : index
    %9 = vector.load %arg2[%c0_3, %c0_4] : memref<1x128xf32, #tpu.memory_space<vmem>>, vector<1x128xf32>
    %10 = vector.broadcast %8 : vector<8x1xf32> to vector<8x128xf32>
    %11 = arith.mulf %0, %10 : vector<8x128xf32>
    %12 = vector.broadcast %9 : vector<1x128xf32> to vector<8x128xf32>
    %13 = arith.mulf %11, %12 : vector<8x128xf32>
    %c0_5 = arith.constant 0 : index
    %c0_6 = arith.constant 0 : index
    %14 = vector.load %arg3[%c0_5, %c0_6] : memref<1x128xf32, #tpu.memory_space<vmem>>, vector<1x128xf32>
    %15 = vector.broadcast %14 : vector<1x128xf32> to vector<8x128xf32>
    %16 = arith.addf %13, %15 : vector<8x128xf32>
    %c0_7 = arith.constant 0 : index
    %c0_8 = arith.constant 0 : index
    %17 = vector.load %arg4[%c0_7, %c0_8] : memref<8x128xf32, #tpu.memory_space<vmem>>, vector<8x128xf32>
    tpu.vector_store %arg4[%c0_7, %c0_8], %16 {strides = array<i32>} : memref<8x128xf32, #tpu.memory_space<vmem>>, vector<8x128xf32>,
    return
  }
  func.func @transform_0(%arg0: i32) -> (i32, i32) {
    %c0_i32 = arith.constant 0 : i32
    %c0_i32_0 = arith.constant 0 : i32
    return %arg0, %c0_i32 : i32, i32
  }
  func.func @transform_1(%arg0: i32) -> (i32, i32) {
    %c0_i32 = arith.constant 0 : i32
    %c0_i32_0 = arith.constant 0 : i32
    %c0_i32_1 = arith.constant 0 : i32
    return %c0_i32, %c0_i32_0 : i32, i32
  }
  func.func @transform_2(%arg0: i32) -> (i32, i32) {
    %c0_i32 = arith.constant 0 : i32
    %c0_i32_0 = arith.constant 0 : i32
    %c0_i32_1 = arith.constant 0 : i32
    return %c0_i32, %c0_i32_0 : i32, i32
  }
  func.func @transform_3(%arg0: i32) -> (i32, i32) {
    %c0_i32 = arith.constant 0 : i32
    %c0_i32_0 = arith.constant 0 : i32
    return %arg0, %c0_i32 : i32, i32
  }
}

</mosaic_0001>

<llo_original>
// kernel: tpu_custom_call.1
$region0: #{tpu_custom_call.1}
  #allocation0 [shape = 'u32[]', space=smem, size = 0x4, offset = 0x4, fixed_abs, tag = 'smem constant byte address 0x4 - core index']
  #allocation1 [shape = 'u32[144,128]{1,0:T(1,128)}', space=vmem, size = 0x12000, scoped, tag = 'internal scratch']
  %s0 = inlined_call_operand.hbm [shape: f32[16,128], index: 0, kind: input, shape index: {}]
  %s1 = inlined_call_operand.vmem [shape: f32[1,128], index: 1, kind: input, shape index: {}]
  %s2 = inlined_call_operand.vmem [shape: f32[1,128], index: 2, kind: input, shape index: {}]
  %s3 = inlined_call_operand.hbm [shape: f32[16,128], index: 3, kind: output, shape index: {}]
  %s4 = sld [smem:[#allocation0]]
  $region49: #{tpu_custom_call.1} parent=0
    _
  %s6 = ssub.s32 1, %s4
  %s7 = scalar_select 0, %s6, %s4
  $region1: #{tpu_custom_call.1} parent=0
    #allocation2 [shape = 'u8[8192]{0}', space=vmem, size = 0x2000, scoped, tag = 'input window, operand 0']
    #allocation3 [shape = 's32[2]{0}', space=sflag, size = 0x8, scoped, tag = 'scoped memory for tpu_custom_call.1']
    #allocation4 [shape = 's32[2]{0}', space=sflag, size = 0x8, scoped, tag = 'scoped memory for tpu_custom_call.1']
    #allocation5 [shape = 'u8[8192]{0}', space=vmem, size = 0x2000, scoped, tag = 'output window, operand 0']
    %8 = vsyncpa [#allocation3], 0
    %s9 = scalar_lea.sflag [#allocation3], 1
    %10 = vsyncpa %s9, 0
    %11 = vsyncpa [#allocation4], 0
    %s12 = scalar_lea.sflag [#allocation4], 1
    %13 = vsyncpa %s12, 0
    loop: start=0, step=1, limit=4
    $region2: #{tpu_custom_call.1} parent=1 // loop_pre_header
      _
    $region3: #{tpu_custom_call.1} parent=1 // loop_header
      %s15 = sphi 0, %s19
      %p16 = scmp.ge.s32.totalorder %s15, 4
      %s25 = sphi 0, %s27
      %s28 = sphi 0, %s25
      %s29 = sphi 0, %s28
      %s45 = sphi 0, %s29
      %s49 = sphi 0, %s49
      %s51 = sphi 0, %s49
      %s52 = sphi 0, %s51
      %s66 = sphi 0, %s52
      %s70 = sphi 0, %s70
      %s72 = sphi 0, %s70
      %s73 = sphi 0, %s72
      %s87 = sphi 0, %s73
      %s93 = sphi 0, %s95
      %s96 = sphi 0, %s93
      %s97 = sphi 0, %s96
      %s113 = sphi 0, %s97
    $region4: #{tpu_custom_call.1} parent=1 // loop_header_branch
      %18 = sbr.rel (%p16) target = $region8
    $region5: #{tpu_custom_call.1} parent=1 // loop_body
      %s20 = ssub.s32 %s15, 1
      %s21 = ssub.s32 %s15, 2
      %s22 = sadd.s32 %s15, 1
      %s23 = ssub.s32 %s15, %s22
      %p24 = scmp.eq.s32.totalorder %s23, 0
      %s26 = sadd.s32 %s25, 1
      %s27 = scalar_select %p24, %s25, %s26
      %p30 = pneg %p24
      %p31 = scmp.eq.s32.totalorder %s15, 1
      %p32 = por %p30, %p31
      %p33 = scmp.ne.s32.totalorder %s25, %s28
      %p34 = scmp.eq.s32.totalorder %s15, 0
      %p35 = por %p33, %p34
      %p36 = scmp.ne.s32.totalorder %s25, %s28
      %p37 = scmp.eq.s32.totalorder %s20, 1
      %p38 = por %p36, %p37
      %p39 = scmp.ne.s32.totalorder %s28, %s29
      %p40 = scmp.eq.s32.totalorder %s20, 0
      %p41 = por %p39, %p40
      %p42 = scmp.ne.s32.totalorder %s28, %s29
      %p43 = scmp.eq.s32.totalorder %s21, 1
      %p44 = por %p42, %p43
      %p46 = scmp.ne.s32.totalorder %s29, %s45
      %p47 = scmp.eq.s32.totalorder %s21, 0
      %p48 = por %p46, %p47
      %s50 = sadd.s32 %s49, 1
      %p53 = scmp.eq.s32.totalorder %s15, 1
      %p54 = scmp.ne.s32.totalorder %s49, %s51
      %p55 = scmp.eq.s32.totalorder %s15, 0
      %p56 = por %p54, %p55
      %p57 = scmp.ne.s32.totalorder %s49, %s51
      %p58 = scmp.eq.s32.totalorder %s20, 1
      %p59 = por %p57, %p58
      %p60 = scmp.ne.s32.totalorder %s51, %s52
      %p61 = scmp.eq.s32.totalorder %s20, 0
      %p62 = por %p60, %p61
      %p63 = scmp.ne.s32.totalorder %s51, %s52
      %p64 = scmp.eq.s32.totalorder %s21, 1
      %p65 = por %p63, %p64
      %p67 = scmp.ne.s32.totalorder %s52, %s66
      %p68 = scmp.eq.s32.totalorder %s21, 0
      %p69 = por %p67, %p68
      %s71 = sadd.s32 %s70, 1
      %p74 = scmp.eq.s32.totalorder %s15, 1
      %p75 = scmp.ne.s32.totalorder %s70, %s72
      %p76 = scmp.eq.s32.totalorder %s15, 0
      %p77 = por %p75, %p76
      %p78 = scmp.ne.s32.totalorder %s70, %s72
      %p79 = scmp.eq.s32.totalorder %s20, 1
      %p80 = por %p78, %p79
      %p81 = scmp.ne.s32.totalorder %s72, %s73
      %p82 = scmp.eq.s32.totalorder %s20, 0
      %p83 = por %p81, %p82
      %p84 = scmp.ne.s32.totalorder %s72, %s73
      %p85 = scmp.eq.s32.totalorder %s21, 1
      %p86 = por %p84, %p85
      %p88 = scmp.ne.s32.totalorder %s73, %s87
      %p89 = scmp.eq.s32.totalorder %s21, 0
      %p90 = por %p88, %p89
      %s91 = ssub.s32 %s15, %s22
      %p92 = scmp.eq.s32.totalorder %s91, 0
      %s94 = sadd.s32 %s93, 1
      %s95 = scalar_select %p92, %s93, %s94
      %p98 = pneg %p92
      %p99 = scmp.eq.s32.totalorder %s15, 1
      %p100 = por %p98, %p99
      %p101 = scmp.ne.s32.totalorder %s93, %s96
      %p102 = scmp.eq.s32.totalorder %s15, 0
      %p103 = por %p101, %p102
      %p104 = scmp.ne.s32.totalorder %s93, %s96
      %p105 = scmp.eq.s32.totalorder %s20, 1
      %p106 = por %p104, %p105
      %p107 = scmp.ne.s32.totalorder %s96, %s97
      %p108 = scmp.eq.s32.totalorder %s20, 0
      %p109 = por %p107, %p108
      %p110 = scmp.ne.s32.totalorder %s96, %s97
      %p111 = scmp.eq.s32.totalorder %s21, 1
      %p112 = por %p110, %p111
      %p114 = scmp.ne.s32.totalorder %s97, %s113
      %p115 = scmp.eq.s32.totalorder %s21, 0
      %p116 = por %p114, %p115
      %p117 = scmp.le.s32.totalorder 1, %s15
      %p118 = scmp.lt.s32.totalorder %s15, 3
      %p119 = pnand %p117, %p118
      %p120 = pneg %p119
      // Predicated region
      $region9: #{tpu_custom_call.1} parent=5 // pred_check
        _
      $region10: #{tpu_custom_call.1} parent=5 // pred_check_branch
        %122 = sbr.rel (%p119) target = $region12
      $region11: #{tpu_custom_call.1} parent=5 // pred_region
        %s123 = ssub.s32 %s15, 1
        // Predicated region
        $region13: #{tpu_custom_call.1} parent=11 // pred_check
          %p124 = pneg %p62
        $region14: #{tpu_custom_call.1} parent=11 // pred_check_branch
          %126 = sbr.rel (%p124) target = $region16
        $region15: #{tpu_custom_call.1} parent=11 // pred_region
          _
        $region16: #{tpu_custom_call.1} parent=11 // pred_fallthru
          _
        // Predicated region
        $region17: #{tpu_custom_call.1} parent=11 // pred_check
          %p127 = pneg %p83
        $region18: #{tpu_custom_call.1} parent=11 // pred_check_branch
          %129 = sbr.rel (%p127) target = $region20
        $region19: #{tpu_custom_call.1} parent=11 // pred_region
          _
        $region20: #{tpu_custom_call.1} parent=11 // pred_fallthru
          _
      $region12: #{tpu_custom_call.1} parent=5 // pred_fallthru
        _
      %p130 = scmp.lt.s32.totalorder %s15, 2
      // Predicated region
      $region21: #{tpu_custom_call.1} parent=5 // pred_check
        %p131 = pneg %p130
      $region22: #{tpu_custom_call.1} parent=5 // pred_check_branch
        %133 = sbr.rel (%p131) target = $region24
      $region23: #{tpu_custom_call.1} parent=5 // pred_region
        // Predicated region
        $region25: #{tpu_custom_call.1} parent=23 // pred_check
          %p134 = pneg %p35
        $region26: #{tpu_custom_call.1} parent=23 // pred_check_branch
          %136 = sbr.rel (%p134) target = $region28
        $region27: #{tpu_custom_call.1} parent=23 // pred_region
          %s137 = sand.u32 %s25, 1
          %s138 = scalar_lea.sflag [#allocation3], %s137
          %s139 = sand.u32 %s25, 1
          %s140 = smul.addr %s139, 8
          %s141 = scalar_lea.vmem [#allocation2], %s140
          %s143 = ssub.s32 128, 128
          %144 = vsyncadd %s138, %s143
          %s145 = smul.addr %s15, 128
          %s146 = scalar_lea.hbm %s0, %s145
          %s148 = sshll.u32 %s141, 4
          %s149 = int_to_ptr.vmem [resolvable:$true] %s148
          %151 = dma.hbm_to_vmem [thread:$0]  %s146, 128, %s149, %s138
        $region28: #{tpu_custom_call.1} parent=23 // pred_fallthru
          _
      $region24: #{tpu_custom_call.1} parent=5 // pred_fallthru
        _
      %p152 = scmp.le.s32.totalorder 1, %s15
      %p153 = scmp.lt.s32.totalorder %s15, 3
      %p154 = pnand %p152, %p153
      %p155 = pneg %p154
      // Predicated region
      $region29: #{tpu_custom_call.1} parent=5 // pred_check
        _
      $region30: #{tpu_custom_call.1} parent=5 // pred_check_branch
        %157 = sbr.rel (%p154) target = $region32
      $region31: #{tpu_custom_call.1} parent=5 // pred_region
        %s158 = ssub.s32 %s15, 1
        %s159 = sand.u32 %s28, 1
        %s160 = scalar_lea.sflag [#allocation3], %s159
        %s161 = sand.u32 %s28, 1
        %s162 = smul.addr %s161, 8
        %s163 = scalar_lea.vmem [#allocation2], %s162
        // Predicated region
        $region33: #{tpu_custom_call.1} parent=31 // pred_check
          %p164 = pneg %p41
        $region34: #{tpu_custom_call.1} parent=31 // pred_check_branch
          %166 = sbr.rel (%p164) target = $region36
        $region35: #{tpu_custom_call.1} parent=31 // pred_region
          %167 = dma.done %s160, 128
        $region36: #{tpu_custom_call.1} parent=31 // pred_fallthru
          _
        %s168 = sand.u32 %s28, 1
        %s169 = scalar_lea.sflag [#allocation3], %s168
        %s170 = sand.u32 %s28, 1
        %s171 = smul.addr %s170, 8
        %s172 = scalar_lea.vmem [#allocation2], %s171
        %p173 = pneg %p41
        %p174 = pneg %p38
        %p175 = pneg %p62
        %p176 = pneg %p59
        %p177 = pneg %p83
        %p178 = pneg %p80
        %p179 = pneg %p109
        %p180 = pneg %p106
        %s181 = sand.u32 %s96, 1
        %s182 = scalar_lea.sflag [#allocation4], %s181
        %s183 = sand.u32 %s96, 1
        %s184 = smul.addr %s183, 8
        %s185 = scalar_lea.vmem [#allocation5], %s184
        %v186 = vld [vmem:[%s163] sm:$0xff]
        %v187 = vmul.f32 %v186, %v186
        %188 = vadd.xlane.f32.xlu0 %v187
        %v189 = vpop.xlane.xlu0 %188
        %v190 = vrcp.pop 128.0
        %v191 = vmul.f32 %v189, %v190
        %v192 = vadd.f32 %v191, 1e-05
        %v193 = vrsqrt.pop %v192
        %v194 = vld [vmem:[%s1] sm:$0x1]
        %v195 = vmul.f32 %v186, %v193
        %v197 = vlaneseq
        %v198 = vshrl.u32 %v197, 7
        %v199 = vsub.s32 0, %v198
        %v200 = vrot.slane %v194, %v199
        %v202 = vmul.f32 %v195, %v200
        %v203 = vld [vmem:[%s2] sm:$0x1]
        %v205 = vlaneseq
        %v206 = vshrl.u32 %v205, 7
        %v207 = vsub.s32 0, %v206
        %v208 = vrot.slane %v203, %v207
        %v210 = vadd.f32 %v202, %v208
        %211 = vst [vmem:[%s185] sm:$0xff] %v210
        %s212 = sand.u32 %s96, 1
        %s213 = scalar_lea.sflag [#allocation4], %s212
        %s214 = sand.u32 %s96, 1
        %s215 = smul.addr %s214, 8
        %s216 = scalar_lea.vmem [#allocation5], %s215
        // Predicated region
        $region37: #{tpu_custom_call.1} parent=31 // pred_check
          %p217 = pneg %p106
        $region38: #{tpu_custom_call.1} parent=31 // pred_check_branch
          %219 = sbr.rel (%p217) target = $region40
        $region39: #{tpu_custom_call.1} parent=31 // pred_region
          %s221 = ssub.s32 128, 128
          %222 = vsyncadd %s213, %s221
          %s223 = smul.addr %s20, 128
          %s224 = scalar_lea.hbm %s3, %s223
          %s226 = sshll.u32 %s216, 4
          %s227 = int_to_ptr.vmem [resolvable:$true] %s226
          %229 = dma.vmem_to_hbm [thread:$0]  %s227, 128, %s224, %s213
        $region40: #{tpu_custom_call.1} parent=31 // pred_fallthru
          _
      $region32: #{tpu_custom_call.1} parent=5 // pred_fallthru
        _
      %p230 = scmp.le.s32.totalorder 2, %s15
      // Predicated region
      $region41: #{tpu_custom_call.1} parent=5 // pred_check
        %p231 = pneg %p230
      $region42: #{tpu_custom_call.1} parent=5 // pred_check_branch
        %233 = sbr.rel (%p231) target = $region44
      $region43: #{tpu_custom_call.1} parent=5 // pred_region
        %s234 = ssub.s32 %s15, 2
        // Predicated region
        $region45: #{tpu_custom_call.1} parent=43 // pred_check
          %p235 = pneg %p112
        $region46: #{tpu_custom_call.1} parent=43 // pred_check_branch
          %237 = sbr.rel (%p235) target = $region48
        $region47: #{tpu_custom_call.1} parent=43 // pred_region
          %s238 = sand.u32 %s97, 1
          %s239 = scalar_lea.sflag [#allocation4], %s238
          %s240 = sand.u32 %s97, 1
          %s241 = smul.addr %s240, 8
          %s242 = scalar_lea.vmem [#allocation5], %s241
          %243 = dma.done %s239, 128
        $region48: #{tpu_custom_call.1} parent=43 // pred_fallthru
          _
      $region44: #{tpu_custom_call.1} parent=5 // pred_fallthru
        _
    $region6: #{tpu_custom_call.1} parent=1 // loop_footer
      %s19 = sadd.s32 1, %s15
    $region7: #{tpu_custom_call.1} parent=1 // loop_footer_branch
      %14 = sbr.rel target = $region3
    $region8: #{tpu_custom_call.1} parent=1 // loop_exit
      _
    %244 = vsyncpa [#allocation3], 1
    %s245 = scalar_lea.sflag [#allocation3], 1
    %246 = vsyncpa %s245, 1
    %247 = vsyncpa [#allocation4], 1
    %s248 = scalar_lea.sflag [#allocation4], 1
    %249 = vsyncpa %s248, 1

</llo_original>
